<compile_context>
chip_gen: v7x
topology: tpu7x:2x2x1
jax: 0.10.0
libtpu: 0.0.40
codegen_flags: <defaults>
</compile_context>

<pallas_src>
import functools

import jax
import jax.numpy as jnp
from jax.experimental import pallas as pl
from jax.experimental.pallas import tpu as pltpu


_STEP_TARGET_BYTES = 4 << 20     # aim for >= ~4 MiB of x per grid step


def _round_up(n, m):
    return -(-n // m) * m


def _sublane_pack(*dtypes):
    """Native sublane packing of the narrowest dtype involved (8/16/32 rows)."""
    return max(32 // jnp.dtype(d).itemsize for d in dtypes)


def _vmem_caps():
    """Returns (physical VMEM bytes, tile budget bytes, high vmem limit bytes)."""
    try:
        cap = int(pltpu.get_tpu_info().vmem_capacity_bytes)
    except Exception:                 # not resolvable -> assume smallest (v7x: 64 MiB)
        cap = 64 << 20
    budget = cap * 3 // 8             # ~24 MiB on v7x, ~48 MiB on v5e/v6e
    limit_hi = cap * 3 // 4           # ~48 MiB on v7x, ~96 MiB on v5e/v6e
    return cap, budget, limit_hi


# ----------------------------- kernels --------------------------------------


def _pos_enc_kernel_2d(x_ref, pe_ref, o_ref, *, batch, d_model, sliced):
    # x_ref / o_ref: (TS, batch*D)   pe_ref: (TS, D)
    pe = pe_ref[...]
    if batch == 1:
        o_ref[...] = (x_ref[...] + pe).astype(o_ref.dtype)
    elif sliced:
        # Per-batch static lane slices on 128-lane boundaries: free sub-views,
        # no (TS, batch*D) replica of pe is ever materialized.
        for b in range(batch):
            sl = slice(b * d_model, (b + 1) * d_model)
            o_ref[:, sl] = (x_ref[:, sl] + pe).astype(o_ref.dtype)
    else:
        # D not 128-aligned: keep one full-width add (known-good lowering).
        o_ref[...] = (x_ref[...] + jnp.tile(pe, (1, batch))).astype(o_ref.dtype)


def _pos_enc_kernel_3d(x_ref, pe_ref, o_ref):
    # x_ref / o_ref: (TS, B, D)   pe_ref: (TS, 1, D); broadcasts over batch.
    o_ref[...] = (x_ref[...] + pe_ref[...]).astype(o_ref.dtype)


# --------------------------- tile selection ----------------------------------


def _choose_tiles_2d(S, B, D, x_it, pe_it, o_it, pack, budget):
    def footprint(ts, bt):
        # Double-buffered pipeline buffers: x tile + out tile + pe tile.
        return 2 * (ts * bt * D * (x_it + o_it) + ts * D * pe_it)

    # Batch (lane) tiling fallback: only if even a minimal sequence tile over
    # the full batch would blow the VMEM budget (huge B*D rows).
    bt = B
    if B > 1 and footprint(pack, B) > budget:
        for cand in range(B - 1, 0, -1):
            if B % cand or (cand * D) % 128:
                continue
            if footprint(pack, cand) <= budget:
                bt = cand
                break
        # If no suitable divisor exists keep bt = B (correctness first); the
        # compiler vmem limit is raised to cover the footprint by the caller.

    row_in_bytes = bt * D * x_it
    row_all_bytes = bt * D * (x_it + o_it) + D * pe_it

    ts_budget = (budget // (2 * row_all_bytes)) // pack * pack
    ts_target = _round_up(pl.cdiv(_STEP_TARGET_BYTES, max(1, row_in_bytes)), pack)
    ts = min(max(pack, ts_budget), ts_target)
    # Keep >= 4 sequence steps when S allows so each v7x TensorCore gets >= 2
    # steps and BlockSpec double-buffering actually overlaps DMA with compute.
    if S > 4 * pack:
        ts = min(ts, max(pack, _round_up(pl.cdiv(S, 4), pack)))
    ts = max(pack, min(ts, _round_up(S, pack)))   # always a sublane-pack multiple
    return ts, bt, footprint(ts, bt)


def _choose_ts_3d(S, B, D, x_it, pe_it, o_it, pack, budget):
    # Account for sublane/lane padding of the (B, D) minor dims.
    b_pad = _round_up(B, pack)
    d_pad = _round_up(D, 128)
    row_all = b_pad * d_pad * (x_it + o_it) + d_pad * pe_it
    ts_budget = max(1, budget // (2 * row_all))
    ts_target = max(1, pl.cdiv(_STEP_TARGET_BYTES, b_pad * d_pad * x_it))
    ts = min(ts_budget, ts_target)
    if S > 4 * pack:
        ts = min(ts, max(pack, pl.cdiv(S, 4)))
    ts = max(1, min(ts, S))                        # leading dim: no (8,128) rule
    return ts, 2 * row_all * ts


# ------------------------------ wrapper ---------------------------------------


def positional_encoding(x, pe, *, donate_x=False):
    """x: (S, B, D), pe: (max_len, 1, D). Returns x + pe[:S] (PyTorch forward)."""
    S, B, D = x.shape
    max_len, one, d_model = pe.shape
    assert one == 1 and d_model == D and S <= max_len

    out_dtype = jnp.result_type(x.dtype, pe.dtype)   # PyTorch-style promotion
    x_it = jnp.dtype(x.dtype).itemsize
    pe_it = jnp.dtype(pe.dtype).itemsize
    o_it = jnp.dtype(out_dtype).itemsize
    pack = _sublane_pack(x.dtype, pe.dtype, out_dtype)

    cap, budget, limit_hi = _vmem_caps()
    io_aliases = {0: 0} if (donate_x and out_dtype == jnp.dtype(x.dtype)) else {}

    lane_dense = (B == 1) or ((B * D) % 128 == 0)

    if lane_dense:
        ts, bt, fp = _choose_tiles_2d(S, B, D, x_it, pe_it, o_it, pack, budget)
        vmem_limit = int(min(cap, min(limit_hi, max(48 << 20, fp + (8 << 20)))))
        grid = (pl.cdiv(S, ts), pl.cdiv(B, bt))

        x2 = x.reshape(S, B * D)             # free: collapses contiguous trailing dims
        pe2 = pe.reshape(max_len, D)         # free: middle dim is 1
        out2 = pl.pallas_call(
            functools.partial(
                _pos_enc_kernel_2d, batch=bt, d_model=D, sliced=(D % 128 == 0)
            ),
            out_shape=jax.ShapeDtypeStruct((S, B * D), out_dtype),
            grid_spec=pltpu.PrefetchScalarGridSpec(
                num_scalar_prefetch=0,
                grid=grid,
                in_specs=[
                    pl.BlockSpec((ts, bt * D), lambda i, j: (i, j)),
                    pl.BlockSpec((ts, D), lambda i, j: (i, 0)),
                ],
                out_specs=pl.BlockSpec((ts, bt * D), lambda i, j: (i, j)),
            ),
            compiler_params=pltpu.CompilerParams(
                dimension_semantics=("parallel", "parallel"),
                vmem_limit_bytes=vmem_limit,
            ),
            input_output_aliases=io_aliases,
        )(x2, pe2)
        return out2.reshape(S, B, D)

    # Fallback ((B*D) % 128 != 0 and B > 1): natural (TS, B, D) broadcast layout.
    ts, fp = _choose_ts_3d(S, B, D, x_it, pe_it, o_it, pack, budget)
    vmem_limit = int(min(cap, min(limit_hi, max(48 << 20, fp + (8 << 20)))))
    return pl.pallas_call(
        _pos_enc_kernel_3d,
        out_shape=jax.ShapeDtypeStruct((S, B, D), out_dtype),
        grid_spec=pltpu.PrefetchScalarGridSpec(
            num_scalar_prefetch=0,
            grid=(pl.cdiv(S, ts),),
            in_specs=[
                pl.BlockSpec((ts, B, D), lambda i: (i, 0, 0)),
                pl.BlockSpec((ts, 1, D), lambda i: (i, 0, 0)),
            ],
            out_specs=pl.BlockSpec((ts, B, D), lambda i: (i, 0, 0)),
        ),
        compiler_params=pltpu.CompilerParams(
            dimension_semantics=("parallel",),
            vmem_limit_bytes=vmem_limit,
        ),
        input_output_aliases=io_aliases,
    )(x, pe)


# ------------------------------- demo -----------------------------------------


if __name__ == "__main__":
    key = jax.random.PRNGKey(0)
    ks = jax.random.split(key, 8)

    def check(x, pe):
        out = jax.block_until_ready(positional_encoding(x, pe))
        ref = x + pe[: x.shape[0]]
        assert out.shape == ref.shape
        assert out.dtype == ref.dtype
        assert jnp.allclose(
            out.astype(jnp.float32), ref.astype(jnp.float32), atol=1e-5, rtol=1e-5
        )

    # Case 1: (B*D) % 128 != 0 -> 3-D broadcast fallback path.
    x1 = jax.random.normal(ks[0], (8, 2, 32), dtype=jnp.float32)
    pe1 = jax.random.normal(ks[1], (64, 1, 32), dtype=jnp.float32)
    check(x1, pe1)

    # Case 2: D % 128 == 0 -> lane-dense 2-D path, per-batch aligned slices.
    x2 = jax.random.normal(ks[2], (16, 2, 128), dtype=jnp.float32)
    pe2 = jax.random.normal(ks[3], (32, 1, 128), dtype=jnp.float32)
    check(x2, pe2)

    # Case 3: B == 1 with unaligned D -> plain (S, D) 2-D case (no sublane pad).
    x3 = jax.random.normal(ks[4], (16, 1, 96), dtype=jnp.float32)
    pe3 = jax.random.normal(ks[5], (40, 1, 96), dtype=jnp.float32)
    check(x3, pe3)

    # Case 4: bf16 x + f32 pe (dtype promotion), multi-step grid with a partial
    # last sequence block, bf16 sublane pack (ts multiple of 16).
    x4 = jax.random.normal(ks[6], (80, 3, 256), dtype=jnp.bfloat16)
    pe4 = jax.random.normal(ks[7], (128, 1, 256), dtype=jnp.float32)
    check(x4, pe4)

    print("KERNEL_OK")
</pallas_src>

<mosaic_0001>
module attributes {stable_mosaic.version = 11 : i64} {
  func.func @_pos_enc_kernel_3d(%arg0: i32, %arg1: memref<8x2x32xf32, #tpu.memory_space<vmem>>, %arg2: memref<8x1x32xf32, #tpu.memory_space<vmem>>, %arg3: memref<8x2x32xf32, #tpu.memory_space<vmem>>) attributes {dimension_semantics = [#tpu.dimension_semantics<parallel>], iteration_bounds = array<i64: 1>, scalar_prefetch = 0 : i64, scratch_operands = 0 : i64, tpu.core_type = #tpu.core_type<tc>, window_params = [{transform_indices = @transform_0, window_bounds = array<i64: 8, 2, 32>}, {transform_indices = @transform_1, window_bounds = array<i64: 8, 1, 32>}, {transform_indices = @transform_2, window_bounds = array<i64: 8, 2, 32>}]} {
    %c0 = arith.constant 0 : index
    %c0_0 = arith.constant 0 : index
    %c0_1 = arith.constant 0 : index
    %0 = vector.load %arg1[%c0, %c0_0, %c0_1] : memref<8x2x32xf32, #tpu.memory_space<vmem>>, vector<8x2x32xf32>
    %c0_2 = arith.constant 0 : index
    %c0_3 = arith.constant 0 : index
    %c0_4 = arith.constant 0 : index
    %1 = vector.load %arg2[%c0_2, %c0_3, %c0_4] : memref<8x1x32xf32, #tpu.memory_space<vmem>>, vector<8x1x32xf32>
    %2 = vector.broadcast %1 : vector<8x1x32xf32> to vector<8x2x32xf32>
    %3 = arith.addf %0, %2 : vector<8x2x32xf32>
    %c0_5 = arith.constant 0 : index
    %c0_6 = arith.constant 0 : index
    %c0_7 = arith.constant 0 : index
    %4 = vector.load %arg3[%c0_5, %c0_6, %c0_7] : memref<8x2x32xf32, #tpu.memory_space<vmem>>, vector<8x2x32xf32>
    tpu.vector_store %arg3[%c0_5, %c0_6, %c0_7], %3 {strides = array<i32>} : memref<8x2x32xf32, #tpu.memory_space<vmem>>, vector<8x2x32xf32>,
    return
  }
  func.func @transform_0(%arg0: i32) -> (i32, i32, i32) {
    %c0_i32 = arith.constant 0 : i32
    %c0_i32_0 = arith.constant 0 : i32
    %c0_i32_1 = arith.constant 0 : i32
    return %arg0, %c0_i32, %c0_i32_0 : i32, i32, i32
  }
  func.func @transform_1(%arg0: i32) -> (i32, i32, i32) {
    %c0_i32 = arith.constant 0 : i32
    %c0_i32_0 = arith.constant 0 : i32
    %c0_i32_1 = arith.constant 0 : i32
    return %arg0, %c0_i32, %c0_i32_0 : i32, i32, i32
  }
  func.func @transform_2(%arg0: i32) -> (i32, i32, i32) {
    %c0_i32 = arith.constant 0 : i32
    %c0_i32_0 = arith.constant 0 : i32
    %c0_i32_1 = arith.constant 0 : i32
    return %arg0, %c0_i32, %c0_i32_0 : i32, i32, i32
  }
}

</mosaic_0001>

<llo_original>
// kernel: tpu_custom_call.1
$region0: #{tpu_custom_call.1}
  #allocation0 [shape = 'u32[]', space=smem, size = 0x4, offset = 0x4, fixed_abs, tag = 'smem constant byte address 0x4 - core index']
  #allocation1 [shape = 'u32[144,128]{1,0:T(1,128)}', space=vmem, size = 0x12000, scoped, tag = 'internal scratch']
  %s0 = inlined_call_operand.vmem [shape: f32[8,2,32], index: 0, kind: input, shape index: {}]
  %s1 = inlined_call_operand.vmem [shape: f32[64,1,32], index: 1, kind: input, shape index: {}]
  %s2 = inlined_call_operand.hbm [shape: f32[8,2,32], index: 2, kind: output, shape index: {}]
  %s3 = sld [smem:[#allocation0]]
  $region18: #{tpu_custom_call.1} parent=0
    _
  %s5 = ssub.s32 1, %s3
  %s6 = scalar_select 0, %s5, %s3
  $region1: #{tpu_custom_call.1} parent=0
    #allocation2 [shape = 'u8[8192]{0}', space=vmem, size = 0x2000, scoped, tag = 'output window, operand 0, single buffered']
    #allocation3 [shape = 's32[1]{0}', space=sflag, size = 0x4, scoped, tag = 'scoped memory for tpu_custom_call.1']
    %7 = vsyncpa [#allocation3], 0
    // Predicated region
    $region2: #{tpu_custom_call.1} parent=1 // pred_check
      _
    $region3: #{tpu_custom_call.1} parent=1 // pred_check_branch
      %9 = sbr.rel (0) target = $region5
    $region4: #{tpu_custom_call.1} parent=1 // pred_region
      _
    $region5: #{tpu_custom_call.1} parent=1 // pred_fallthru
      _
    // Predicated region
    $region6: #{tpu_custom_call.1} parent=1 // pred_check
      _
    $region7: #{tpu_custom_call.1} parent=1 // pred_check_branch
      %11 = sbr.rel (0) target = $region9
    $region8: #{tpu_custom_call.1} parent=1 // pred_region
      _
    $region9: #{tpu_custom_call.1} parent=1 // pred_fallthru
      _
    %v12 = vld [vmem:[%s0] sm:$0x3]
    %v13 = vld [vmem:[%s0 + $0x2] sm:$0x3]
    %v14 = vld [vmem:[%s0 + $0x4] sm:$0x3]
    %v15 = vld [vmem:[%s0 + $0x6] sm:$0x3]
    %v16 = vld [vmem:[%s0 + $0x8] sm:$0x3]
    %v17 = vld [vmem:[%s0 + $0xa] sm:$0x3]
    %v18 = vld [vmem:[%s0 + $0xc] sm:$0x3]
    %v19 = vld [vmem:[%s0 + $0xe] sm:$0x3]
    %v20 = vld [vmem:[%s1] sm:$0x1]
    %v21 = vld [vmem:[%s1 + $0x1] sm:$0x1]
    %v22 = vld [vmem:[%s1 + $0x2] sm:$0x1]
    %v23 = vld [vmem:[%s1 + $0x3] sm:$0x1]
    %v24 = vld [vmem:[%s1 + $0x4] sm:$0x1]
    %v25 = vld [vmem:[%s1 + $0x5] sm:$0x1]
    %v26 = vld [vmem:[%s1 + $0x6] sm:$0x1]
    %v27 = vld [vmem:[%s1 + $0x7] sm:$0x1]
    %v36 = vlaneseq
    %v37 = vshrl.u32 %v36, 7
    %v38 = vsub.s32 0, %v37
    %v39 = vrot.slane %v20, %v38
    %v40 = vlaneseq
    %v41 = vshrl.u32 %v40, 7
    %v42 = vsub.s32 0, %v41
    %v43 = vrot.slane %v21, %v42
    %v44 = vlaneseq
    %v45 = vshrl.u32 %v44, 7
    %v46 = vsub.s32 0, %v45
    %v47 = vrot.slane %v22, %v46
    %v48 = vlaneseq
    %v49 = vshrl.u32 %v48, 7
    %v50 = vsub.s32 0, %v49
    %v51 = vrot.slane %v23, %v50
    %v52 = vlaneseq
    %v53 = vshrl.u32 %v52, 7
    %v54 = vsub.s32 0, %v53
    %v55 = vrot.slane %v24, %v54
    %v56 = vlaneseq
    %v57 = vshrl.u32 %v56, 7
    %v58 = vsub.s32 0, %v57
    %v59 = vrot.slane %v25, %v58
    %v60 = vlaneseq
    %v61 = vshrl.u32 %v60, 7
    %v62 = vsub.s32 0, %v61
    %v63 = vrot.slane %v26, %v62
    %v64 = vlaneseq
    %v65 = vshrl.u32 %v64, 7
    %v66 = vsub.s32 0, %v65
    %v67 = vrot.slane %v27, %v66
    %v76 = vadd.f32 %v12, %v39
    %v77 = vadd.f32 %v13, %v43
    %v78 = vadd.f32 %v14, %v47
    %v79 = vadd.f32 %v15, %v51
    %v80 = vadd.f32 %v16, %v55
    %v81 = vadd.f32 %v17, %v59
    %v82 = vadd.f32 %v18, %v63
    %v83 = vadd.f32 %v19, %v67
    %vm84 = vcmask 254976
    %85 = vst.msk [vmem:[#allocation2] sm:$0x3] %vm84, %v76
    %86 = vst.msk [vmem:[#allocation2 + $0x2] sm:$0x3] %vm84, %v77
    %87 = vst.msk [vmem:[#allocation2 + $0x4] sm:$0x3] %vm84, %v78
    %88 = vst.msk [vmem:[#allocation2 + $0x6] sm:$0x3] %vm84, %v79
    %89 = vst.msk [vmem:[#allocation2 + $0x8] sm:$0x3] %vm84, %v80
    %90 = vst.msk [vmem:[#allocation2 + $0xa] sm:$0x3] %vm84, %v81
    %91 = vst.msk [vmem:[#allocation2 + $0xc] sm:$0x3] %vm84, %v82
    %92 = vst.msk [vmem:[#allocation2 + $0xe] sm:$0x3] %vm84, %v83
    // Predicated region
    $region10: #{tpu_custom_call.1} parent=1 // pred_check
      _
    $region11: #{tpu_custom_call.1} parent=1 // pred_check_branch
      %94 = sbr.rel (0) target = $region13
    $region12: #{tpu_custom_call.1} parent=1 // pred_region
      %s96 = ssub.s32 256, 256
      %97 = vsyncadd [#allocation3], %s96
      %s98 = sshll.u32 [#allocation2], 4
      %s99 = int_to_ptr.vmem [resolvable:$true] %s98
      %104 = dma.vmem_to_hbm [thread:$0]  %s99, 256, %s2, [#allocation3], 32, 32, 2
    $region13: #{tpu_custom_call.1} parent=1 // pred_fallthru
      _
    // Predicated region
    $region14: #{tpu_custom_call.1} parent=1 // pred_check
      _
    $region15: #{tpu_custom_call.1} parent=1 // pred_check_branch
      %106 = sbr.rel (0) target = $region17
    $region16: #{tpu_custom_call.1} parent=1 // pred_region
      %107 = dma.done [#allocation3], 256
    $region17: #{tpu_custom_call.1} parent=1 // pred_fallthru
      _
    %108 = vsyncpa [#allocation3], 1

</llo_original>
